<compile_context>
chip_gen: v7x
topology: tpu7x:2x2x1
jax: 0.10.0
libtpu: 0.0.40
codegen_flags: <defaults>
</compile_context>

<pallas_src>
import functools

import jax
import jax.numpy as jnp
from jax.experimental import pallas as pl
from jax.experimental.pallas import tpu as pltpu

LANES = 128
ACC_ROWS = 32                        # accumulator sublanes: 4 independent f32 vregs
TARGET_TILE_BYTES = 4 * 1024 * 1024  # ~4 MiB per input tile (dtype-aware row count)
NUM_SPLITS = 2                       # leading "parallel" axis (2 TensorCores on v7x)
VMEM_LIMIT_BYTES = 64 * 1024 * 1024


def _sq_diff_sum_kernel(x_ref, y_ref, o_ref, acc_ref, *,
                        total_rows, tile_rows, tiles_per_split, maybe_ragged):
    c = pl.program_id(0)          # split index (TensorCore shard on v7x)
    i = pl.program_id(1)          # row-tile within the split (reduction axis)

    @pl.when(i == 0)
    def _():
        acc_ref[...] = jnp.zeros_like(acc_ref)

    # Native-width HBM reads; cast to f32 on-chip.
    d = x_ref[...].astype(jnp.float32) - y_ref[...].astype(jnp.float32)
    sq = d * d

    def _partial(v):
        # vreg-shaped partial sums: reduce over the leading (major) axis only,
        # leaving ACC_ROWS x 128 independent accumulation chains on the VPU.
        return jnp.sum(v.reshape(tile_rows // ACC_ROWS, ACC_ROWS, LANES), axis=0)

    if maybe_ragged:
        row0 = (c * tiles_per_split + i) * tile_rows
        fully_valid = row0 + tile_rows <= total_rows

        @pl.when(fully_valid)
        def _():
            acc_ref[...] += _partial(sq)

        @pl.when(jnp.logical_not(fully_valid))
        def _():
            # Out-of-range rows hold stale VMEM garbage (possibly NaN/Inf):
            # zero them with a select, NOT a multiply-by-mask.
            row_ids = row0 + jax.lax.broadcasted_iota(jnp.int32, (tile_rows, 1), 0)
            acc_ref[...] += _partial(jnp.where(row_ids < total_rows, sq, 0.0))
    else:
        acc_ref[...] += _partial(sq)

    @pl.when(i == tiles_per_split - 1)
    def _():
        # Per-split partial (sublane reduce only); the wrapper finishes up.
        o_ref[...] = jnp.sum(acc_ref[...], axis=0, keepdims=True)[None]


def psnr_pallas(img1: jax.Array, img2: jax.Array) -> jax.Array:
    """PSNR between two identically-shaped arrays (e.g. NCHW images)."""
    assert img1.shape == img2.shape
    n_elems = img1.size

    x = img1.reshape(-1)
    y = img2.reshape(-1)

    aligned = (n_elems // LANES) * LANES
    tail_sum = None
    if aligned != n_elems:
        # <128-element ragged tail: squared-diff sum in plain JAX (no lane pad).
        xt = x[aligned:].astype(jnp.float32)
        yt = y[aligned:].astype(jnp.float32)
        tail_sum = jnp.sum((xt - yt) * (xt - yt))
        if aligned == 0:
            mse = tail_sum / jnp.float32(n_elems)
            return 20.0 * jnp.log10(255.0 / jnp.sqrt(mse))
        # TODO(synk): this slice still materializes a copy of the aligned
        # prefix in HBM; a fully copy-free ragged path would need 1-D blocks
        # with flat-index masking in-kernel.
        x = x[:aligned]
        y = y[:aligned]

    rows = aligned // LANES
    x2 = x.reshape(rows, LANES)
    y2 = y.reshape(rows, LANES)

    total_rows = rows
    if rows < ACC_ROWS:
        # Tiny input: pad a handful of zero rows (<16 KiB, negligible) so a
        # single ACC_ROWS-high tile covers everything.  Zero pads add 0.
        x2 = jnp.pad(x2, ((0, ACC_ROWS - rows), (0, 0)))
        y2 = jnp.pad(y2, ((0, ACC_ROWS - rows), (0, 0)))
        rows = ACC_ROWS

    # Dtype-aware row tile: ~TARGET_TILE_BYTES per input tile, a multiple of
    # ACC_ROWS, never larger than the (row-aligned) array.
    itemsize = img1.dtype.itemsize
    big_rows = (TARGET_TILE_BYTES // (LANES * itemsize)) // ACC_ROWS * ACC_ROWS
    big_rows = max(big_rows, ACC_ROWS)
    tile_rows = min(big_rows, (rows // ACC_ROWS) * ACC_ROWS)

    tiles_total = pl.cdiv(rows, tile_rows)
    splits = NUM_SPLITS if tiles_total >= NUM_SPLITS else 1
    tiles_per_split = pl.cdiv(tiles_total, splits)
    # Masking is only compiled in when some tile can overhang the data.
    maybe_ragged = (rows % tile_rows != 0) or (tiles_total % splits != 0)

    def tile_index(c, i):
        # Clamp phantom tiles (odd tiles_total split across 2 cores) onto the
        # last real tile; their contribution is masked to zero in the kernel.
        return (jnp.minimum(c * tiles_per_split + i, tiles_total - 1), 0)

    kernel = functools.partial(
        _sq_diff_sum_kernel,
        total_rows=total_rows,
        tile_rows=tile_rows,
        tiles_per_split=tiles_per_split,
        maybe_ragged=maybe_ragged,
    )

    partials = pl.pallas_call(
        kernel,
        out_shape=jax.ShapeDtypeStruct((splits, 1, LANES), jnp.float32),
        grid_spec=pltpu.PrefetchScalarGridSpec(
            num_scalar_prefetch=0,
            grid=(splits, tiles_per_split),
            in_specs=[
                pl.BlockSpec((tile_rows, LANES), tile_index),
                pl.BlockSpec((tile_rows, LANES), tile_index),
            ],
            out_specs=pl.BlockSpec((1, 1, LANES), lambda c, i: (c, 0, 0)),
            scratch_shapes=[pltpu.VMEM((ACC_ROWS, LANES), jnp.float32)],
        ),
        compiler_params=pltpu.CompilerParams(
            dimension_semantics=("parallel", "arbitrary"),
            vmem_limit_bytes=VMEM_LIMIT_BYTES,
        ),
    )(x2, y2)

    total = jnp.sum(partials)
    if tail_sum is not None:
        total = total + tail_sum
    mse = total / jnp.float32(n_elems)
    return 20.0 * jnp.log10(255.0 / jnp.sqrt(mse))


def psnr_reference(img1, img2):
    mse = jnp.mean((img1.astype(jnp.float32) - img2.astype(jnp.float32)) ** 2)
    return 20.0 * jnp.log10(255.0 / jnp.sqrt(mse))


if __name__ == "__main__":
    key = jax.random.PRNGKey(0)
    ks = jax.random.split(key, 10)

    def check(a, b, rtol=1e-5, atol=1e-3):
        out = psnr_pallas(a, b)
        jax.block_until_ready(out)
        ref = psnr_reference(a, b)
        assert jnp.allclose(out, ref, rtol=rtol, atol=atol), (out, ref)

    # Case 1: small NCHW images (module's typical input): single tile,
    # tiny row-pad path.
    a1 = jax.random.uniform(ks[0], (2, 4, 16, 16), jnp.float32, 0.0, 255.0)
    a2 = jax.random.uniform(ks[1], (2, 4, 16, 16), jnp.float32, 0.0, 255.0)
    check(a1, a2)

    # Case 2: two-split grid with a ragged, in-kernel-masked last row-tile.
    b1 = jax.random.uniform(ks[2], (1, 3, 320, 300), jnp.float32, 0.0, 255.0)
    b2 = jax.random.uniform(ks[3], (1, 3, 320, 300), jnp.float32, 0.0, 255.0)
    check(b1, b2)

    # Case 3: element count not a multiple of 128 (tail handled in plain JAX).
    c1 = jax.random.uniform(ks[4], (1, 3, 17, 19), jnp.float32, 0.0, 255.0)
    c2 = jax.random.uniform(ks[5], (1, 3, 17, 19), jnp.float32, 0.0, 255.0)
    check(c1, c2)

    # Case 4: large enough to exercise full-size 4 MiB (8192-row) f32 tiles,
    # the two-way split, and the masked ragged tile.
    d1 = jax.random.uniform(ks[6], (1, 3, 640, 560), jnp.float32, 0.0, 255.0)
    d2 = jax.random.uniform(ks[7], (1, 3, 640, 560), jnp.float32, 0.0, 255.0)
    check(d1, d2)

    # Case 5: native bf16 inputs (bf16 streamed from HBM, cast to f32 on-chip).
    e1 = jax.random.uniform(ks[8], (2, 4, 16, 16), jnp.float32, 0.0, 255.0).astype(jnp.bfloat16)
    e2 = jax.random.uniform(ks[9], (2, 4, 16, 16), jnp.float32, 0.0, 255.0).astype(jnp.bfloat16)
    check(e1, e2)

    print("KERNEL_OK")
</pallas_src>

<mosaic_0001>
module attributes {stable_mosaic.version = 11 : i64} {
  func.func @_sq_diff_sum_kernel(%arg0: i32, %arg1: i32, %arg2: memref<32x128xf32, #tpu.memory_space<vmem>>, %arg3: memref<32x128xf32, #tpu.memory_space<vmem>>, %arg4: memref<1x1x128xf32, #tpu.memory_space<vmem>>, %arg5: memref<32x128xf32, #tpu.memory_space<vmem>>) attributes {dimension_semantics = [#tpu.dimension_semantics<parallel>, #tpu.dimension_semantics<arbitrary>], iteration_bounds = array<i64: 1, 1>, scalar_prefetch = 0 : i64, scratch_operands = 1 : i64, tpu.core_type = #tpu.core_type<tc>, window_params = [{transform_indices = @transform_0, window_bounds = array<i64: 32, 128>}, {transform_indices = @transform_1, window_bounds = array<i64: 32, 128>}, {transform_indices = @transform_2, window_bounds = array<i64: 1, 1, 128>}]} {
    %c0_i32 = arith.constant 0 : i32
    %0 = arith.cmpi eq, %arg1, %c0_i32 : i32
    %1 = arith.extui %0 : i1 to i32
    %c0_i32_0 = arith.constant 0 : i32
    %2 = arith.cmpi ne, %1, %c0_i32_0 : i32
    scf.if %2 {
      %cst_10 = arith.constant 0.000000e+00 : f32
      %15 = vector.broadcast %cst_10 : f32 to vector<32x128xf32>
      %c0_11 = arith.constant 0 : index
      %c0_12 = arith.constant 0 : index
      %16 = vector.load %arg5[%c0_11, %c0_12] : memref<32x128xf32, #tpu.memory_space<vmem>>, vector<32x128xf32>
      tpu.vector_store %arg5[%c0_11, %c0_12], %15 {strides = array<i32>} : memref<32x128xf32, #tpu.memory_space<vmem>>, vector<32x128xf32>,
    } else {
    }
    %c0 = arith.constant 0 : index
    %c0_1 = arith.constant 0 : index
    %3 = vector.load %arg2[%c0, %c0_1] : memref<32x128xf32, #tpu.memory_space<vmem>>, vector<32x128xf32>
    %c0_2 = arith.constant 0 : index
    %c0_3 = arith.constant 0 : index
    %4 = vector.load %arg3[%c0_2, %c0_3] : memref<32x128xf32, #tpu.memory_space<vmem>>, vector<32x128xf32>
    %5 = arith.subf %3, %4 : vector<32x128xf32>
    %6 = arith.mulf %5, %5 : vector<32x128xf32>
    %c0_4 = arith.constant 0 : index
    %c0_5 = arith.constant 0 : index
    %7 = vector.load %arg5[%c0_4, %c0_5] : memref<32x128xf32, #tpu.memory_space<vmem>>, vector<32x128xf32>
    %8 = vector.shape_cast %6 : vector<32x128xf32> to vector<1x32x128xf32>
    %cst = arith.constant dense<0.000000e+00> : vector<32x128xf32>
    %9 = vector.multi_reduction <add>, %8, %cst [0] : vector<1x32x128xf32> to vector<32x128xf32>
    %10 = arith.addf %7, %9 : vector<32x128xf32>
    %c0_6 = arith.constant 0 : index
    %c0_7 = arith.constant 0 : index
    %11 = vector.load %arg5[%c0_6, %c0_7] : memref<32x128xf32, #tpu.memory_space<vmem>>, vector<32x128xf32>
    tpu.vector_store %arg5[%c0_6, %c0_7], %10 {strides = array<i32>} : memref<32x128xf32, #tpu.memory_space<vmem>>, vector<32x128xf32>,
    %c0_i32_8 = arith.constant 0 : i32
    %12 = arith.cmpi eq, %arg1, %c0_i32_8 : i32
    %13 = arith.extui %12 : i1 to i32
    %c0_i32_9 = arith.constant 0 : i32
    %14 = arith.cmpi ne, %13, %c0_i32_9 : i32
    scf.if %14 {
      %c0_10 = arith.constant 0 : index
      %c0_11 = arith.constant 0 : index
      %15 = vector.load %arg5[%c0_10, %c0_11] : memref<32x128xf32, #tpu.memory_space<vmem>>, vector<32x128xf32>
      %cst_12 = arith.constant dense<0.000000e+00> : vector<128xf32>
      %16 = vector.multi_reduction <add>, %15, %cst_12 [0] : vector<32x128xf32> to vector<128xf32>
      %17 = vector.shape_cast %16 : vector<128xf32> to vector<1x128xf32>
      %18 = vector.shape_cast %17 : vector<1x128xf32> to vector<1x1x128xf32>
      %c0_13 = arith.constant 0 : index
      %c0_14 = arith.constant 0 : index
      %c0_15 = arith.constant 0 : index
      %19 = vector.load %arg4[%c0_13, %c0_14, %c0_15] : memref<1x1x128xf32, #tpu.memory_space<vmem>>, vector<1x1x128xf32>
      tpu.vector_store %arg4[%c0_13, %c0_14, %c0_15], %18 {strides = array<i32>} : memref<1x1x128xf32, #tpu.memory_space<vmem>>, vector<1x1x128xf32>,
    } else {
    }
    return
  }
  func.func @transform_0(%arg0: i32, %arg1: i32) -> (i32, i32) {
    %c1_i32 = arith.constant 1 : i32
    %0 = arith.muli %arg0, %c1_i32 : i32
    %1 = arith.addi %0, %arg1 : i32
    %c0_i32 = arith.constant 0 : i32
    %2 = arith.minsi %1, %c0_i32 : i32
    %c0_i32_0 = arith.constant 0 : i32
    %c0_i32_1 = arith.constant 0 : i32
    return %2, %c0_i32_0 : i32, i32
  }
  func.func @transform_1(%arg0: i32, %arg1: i32) -> (i32, i32) {
    %c1_i32 = arith.constant 1 : i32
    %0 = arith.muli %arg0, %c1_i32 : i32
    %1 = arith.addi %0, %arg1 : i32
    %c0_i32 = arith.constant 0 : i32
    %2 = arith.minsi %1, %c0_i32 : i32
    %c0_i32_0 = arith.constant 0 : i32
    %c0_i32_1 = arith.constant 0 : i32
    return %2, %c0_i32_0 : i32, i32
  }
  func.func @transform_2(%arg0: i32, %arg1: i32) -> (i32, i32, i32) {
    %c0_i32 = arith.constant 0 : i32
    %c0_i32_0 = arith.constant 0 : i32
    %c0_i32_1 = arith.constant 0 : i32
    return %arg0, %c0_i32, %c0_i32_0 : i32, i32, i32
  }
}

</mosaic_0001>

<llo_original>
// kernel: tpu_custom_call.1
$region0: #{tpu_custom_call.1}
  #allocation0 [shape = 'u32[]', space=smem, size = 0x4, offset = 0x4, fixed_abs, tag = 'smem constant byte address 0x4 - core index']
  #allocation1 [shape = 'u32[144,128]{1,0:T(1,128)}', space=vmem, size = 0x12000, scoped, tag = 'internal scratch']
  #allocation2 [shape = 'f32[32,128]{1,0:T(8,128)}', space=vmem, size = 0x4000, scoped, tag = 'scratch operand']
  %s0 = inlined_call_operand.hbm [shape: f32[32,128], index: 0, kind: input, shape index: {}]
  %s1 = inlined_call_operand.hbm [shape: f32[32,128], index: 1, kind: input, shape index: {}]
  %s2 = inlined_call_operand.hbm [shape: f32[1,1,128], index: 2, kind: output, shape index: {}]
  %s3 = sld [smem:[#allocation0]]
  $region34: #{tpu_custom_call.1} parent=0
    _
  %s5 = ssub.s32 1, %s3
  %s6 = scalar_select 0, %s5, %s3
  $region1: #{tpu_custom_call.1} parent=0
    #allocation3 [shape = 'u8[16384]{0}', space=vmem, size = 0x4000, scoped, tag = 'input window, operand 0, single buffered']
    #allocation4 [shape = 's32[1]{0}', space=sflag, size = 0x4, scoped, tag = 'scoped memory for tpu_custom_call.1']
    #allocation5 [shape = 's32[1]{0}', space=sflag, size = 0x4, scoped, tag = 'scoped memory for tpu_custom_call.1']
    #allocation6 [shape = 'u8[16384]{0}', space=vmem, size = 0x4000, scoped, tag = 'input window, operand 1, single buffered']
    #allocation7 [shape = 's32[1]{0}', space=sflag, size = 0x4, scoped, tag = 'scoped memory for tpu_custom_call.1']
    #allocation8 [shape = 'u8[512]{0}', space=vmem, size = 0x400, scoped, tag = 'output window, operand 0, single buffered']
    %7 = vsyncpa [#allocation4], 0
    %8 = vsyncpa [#allocation7], 0
    %9 = vsyncpa [#allocation5], 0
    // Predicated region
    $region2: #{tpu_custom_call.1} parent=1 // pred_check
      _
    $region3: #{tpu_custom_call.1} parent=1 // pred_check_branch
      %11 = sbr.rel (0) target = $region5
    $region4: #{tpu_custom_call.1} parent=1 // pred_region
      %s12 = sadd.s32 0, 0
      %p13 = scmp.lt.s32.totalorder %s12, 0
      %s14 = scalar_select %p13, %s12, 0
      %s15 = smul.u32 4, %s14
      %s17 = ssub.s32 512, 512
      %18 = vsyncadd [#allocation4], %s17
      %s19 = smul.addr %s15, 128
      %s20 = scalar_lea.hbm %s0, %s19
      %s21 = sshll.u32 [#allocation3], 4
      %s22 = int_to_ptr.vmem [resolvable:$true] %s21
      %27 = dma.hbm_to_vmem [thread:$0]  %s20, 512, %s22, [#allocation4], 128, 128, 8
    $region5: #{tpu_custom_call.1} parent=1 // pred_fallthru
      _
    // Predicated region
    $region6: #{tpu_custom_call.1} parent=1 // pred_check
      _
    $region7: #{tpu_custom_call.1} parent=1 // pred_check_branch
      %29 = sbr.rel (0) target = $region9
    $region8: #{tpu_custom_call.1} parent=1 // pred_region
      %s30 = sadd.s32 0, 0
      %p31 = scmp.lt.s32.totalorder %s30, 0
      %s32 = scalar_select %p31, %s30, 0
      %s33 = smul.u32 4, %s32
      %s35 = ssub.s32 512, 512
      %36 = vsyncadd [#allocation7], %s35
      %s37 = smul.addr %s33, 128
      %s38 = scalar_lea.hbm %s1, %s37
      %s39 = sshll.u32 [#allocation6], 4
      %s40 = int_to_ptr.vmem [resolvable:$true] %s39
      %45 = dma.hbm_to_vmem [thread:$0]  %s38, 512, %s40, [#allocation7], 128, 128, 8
    $region9: #{tpu_custom_call.1} parent=1 // pred_fallthru
      _
    // Predicated region
    $region10: #{tpu_custom_call.1} parent=1 // pred_check
      _
    $region11: #{tpu_custom_call.1} parent=1 // pred_check_branch
      %47 = sbr.rel (0) target = $region13
    $region12: #{tpu_custom_call.1} parent=1 // pred_region
      %48 = dma.done [#allocation4], 512
    $region13: #{tpu_custom_call.1} parent=1 // pred_fallthru
      _
    // Predicated region
    $region14: #{tpu_custom_call.1} parent=1 // pred_check
      _
    $region15: #{tpu_custom_call.1} parent=1 // pred_check_branch
      %50 = sbr.rel (0) target = $region17
    $region16: #{tpu_custom_call.1} parent=1 // pred_region
      %51 = dma.done [#allocation7], 512
    $region17: #{tpu_custom_call.1} parent=1 // pred_fallthru
      _
    %s52 = sadd.s32 0, 0
    %p53 = scmp.lt.s32.totalorder %s52, 0
    %s54 = scalar_select %p53, %s52, 0
    %s55 = smul.u32 4, %s54
    %s56 = sadd.s32 0, 0
    %p57 = scmp.lt.s32.totalorder %s56, 0
    %s58 = scalar_select %p57, %s56, 0
    %s59 = smul.u32 4, %s58
    %p60 = scmp.eq.s32.totalorder 0, 0
    // Predicated region
    $region18: #{tpu_custom_call.1} parent=1 // pred_check
      %p61 = pneg %p60
    $region19: #{tpu_custom_call.1} parent=1 // pred_check_branch
      %63 = sbr.rel (%p61) target = $region21
    $region20: #{tpu_custom_call.1} parent=1 // pred_region
      %64 = vst [vmem:[#allocation2] sm:$0xff] 0.0
      %65 = vst [vmem:[#allocation2 + $0x8] sm:$0xff] 0.0
      %66 = vst [vmem:[#allocation2 + $0x10] sm:$0xff] 0.0
      %67 = vst [vmem:[#allocation2 + $0x18] sm:$0xff] 0.0
    $region21: #{tpu_custom_call.1} parent=1 // pred_fallthru
      _
    %v68 = vld [vmem:[#allocation3] sm:$0xff]
    %v69 = vld [vmem:[#allocation3 + $0x8] sm:$0xff]
    %v70 = vld [vmem:[#allocation3 + $0x10] sm:$0xff]
    %v71 = vld [vmem:[#allocation3 + $0x18] sm:$0xff]
    %v72 = vld [vmem:[#allocation6] sm:$0xff]
    %v73 = vld [vmem:[#allocation6 + $0x8] sm:$0xff]
    %v74 = vld [vmem:[#allocation6 + $0x10] sm:$0xff]
    %v75 = vld [vmem:[#allocation6 + $0x18] sm:$0xff]
    %v76 = vsub.f32 %v68, %v72
    %v77 = vsub.f32 %v69, %v73
    %v78 = vsub.f32 %v70, %v74
    %v79 = vsub.f32 %v71, %v75
    %v80 = vmul.f32 %v76, %v76
    %v81 = vmul.f32 %v77, %v77
    %v82 = vmul.f32 %v78, %v78
    %v83 = vmul.f32 %v79, %v79
    %v84 = vld [vmem:[#allocation2] sm:$0xff]
    %v85 = vld [vmem:[#allocation2 + $0x8] sm:$0xff]
    %v86 = vld [vmem:[#allocation2 + $0x10] sm:$0xff]
    %v87 = vld [vmem:[#allocation2 + $0x18] sm:$0xff]
    %v88 = vadd.f32 %v80, 0.0
    %v89 = vadd.f32 %v81, 0.0
    %v90 = vadd.f32 %v82, 0.0
    %v91 = vadd.f32 %v83, 0.0
    %v92 = vadd.f32 %v84, %v88
    %v93 = vadd.f32 %v85, %v89
    %v94 = vadd.f32 %v86, %v90
    %v95 = vadd.f32 %v87, %v91
    %96 = vst [vmem:[#allocation2] sm:$0xff] %v92
    %97 = vst [vmem:[#allocation2 + $0x8] sm:$0xff] %v93
    %98 = vst [vmem:[#allocation2 + $0x10] sm:$0xff] %v94
    %99 = vst [vmem:[#allocation2 + $0x18] sm:$0xff] %v95
    // Predicated region
    $region22: #{tpu_custom_call.1} parent=1 // pred_check
      %p100 = pneg %p60
    $region23: #{tpu_custom_call.1} parent=1 // pred_check_branch
      %102 = sbr.rel (%p100) target = $region25
    $region24: #{tpu_custom_call.1} parent=1 // pred_region
      %v103 = vld [vmem:[#allocation2] sm:$0xff]
      %v104 = vld [vmem:[#allocation2 + $0x8] sm:$0xff]
      %v105 = vld [vmem:[#allocation2 + $0x10] sm:$0xff]
      %v106 = vld [vmem:[#allocation2 + $0x18] sm:$0xff]
      %v107 = vadd.f32 %v103, %v104
      %v108 = vadd.f32 %v107, %v105
      %v109 = vadd.f32 %v108, %v106
      %v110 = vrot.slane %v109, 4
      %v111 = vadd.f32 %v109, %v110
      %v112 = vrot.slane %v111, 2
      %v113 = vadd.f32 %v111, %v112
      %v114 = vrot.slane %v113, 1
      %v115 = vadd.f32 %v113, %v114
      %116 = vst [vmem:[#allocation8] sm:$0x1] %v115
    $region25: #{tpu_custom_call.1} parent=1 // pred_fallthru
      _
    // Predicated region
    $region26: #{tpu_custom_call.1} parent=1 // pred_check
      _
    $region27: #{tpu_custom_call.1} parent=1 // pred_check_branch
      %118 = sbr.rel (0) target = $region29
    $region28: #{tpu_custom_call.1} parent=1 // pred_region
      %s120 = ssub.s32 16, 16
      %121 = vsyncadd [#allocation5], %s120
      %s123 = sshll.u32 [#allocation8], 4
      %s124 = int_to_ptr.vmem [resolvable:$true] %s123
      %126 = dma.vmem_to_hbm [thread:$0]  %s124, 16, %s2, [#allocation5]
    $region29: #{tpu_custom_call.1} parent=1 // pred_fallthru
      _
    // Predicated region
    $region30: #{tpu_custom_call.1} parent=1 // pred_check
      _
    $region31: #{tpu_custom_call.1} parent=1 // pred_check_branch
      %128 = sbr.rel (0) target = $region33
    $region32: #{tpu_custom_call.1} parent=1 // pred_region
      %129 = dma.done [#allocation5], 16
    $region33: #{tpu_custom_call.1} parent=1 // pred_fallthru
      _
    %130 = vsyncpa [#allocation4], 1
    %131 = vsyncpa [#allocation7], 1
    %132 = vsyncpa [#allocation5], 1

</llo_original>
